<compile_context>
chip_gen: v6e
topology: v6e:2x2x1
jax: 0.10.0
libtpu: 0.0.40
codegen_flags: <defaults>
</compile_context>

<pallas_src>
import functools

import jax
import jax.numpy as jnp
from jax import lax
from jax.experimental import pallas as pl
from jax.experimental.pallas import tpu as pltpu


def _round_up(a, b):
    return (a + b - 1) // b * b


def _blob_layout(D, H):
    """Row layout of the packed parameter blob (lane width L)."""
    Hs = _round_up(H, 8)                       # hidden rounded to sublane multiple
    L = max(128, _round_up(D, 128), _round_up(Hs, 128))
    r1 = 0                                     # W1 : (Hs, D)  rows r1 .. r1+Hs
    r2 = Hs                                    # W2 : (Hs, Hs) rows r2 .. r2+Hs
    r3 = 2 * Hs                                # W3 : (8,  Hs) rows r3 .. r3+8 (row 0 real)
    rb1 = r3 + 8                               # b1 column (Hs rows, lane 0)
    rb2 = rb1 + Hs                             # b2 column (Hs rows, lane 0)
    rb3 = rb2 + Hs                             # b3 column (8 rows,  lane 0, row 0 real)
    n_rows = rb3 + 8
    return dict(D=D, H=H, Hs=Hs, L=L, r1=r1, r2=r2, r3=r3,
                rb1=rb1, rb2=rb2, rb3=rb3, n_rows=n_rows)


def _mlp_kernel(x_ref, w_ref, o_ref, *, D, Hs, r1, r2, r3, rb1, rb2, rb3):
    # x_ref: (Bt, D) input tile (batch on sublanes, un-padded feature dim)
    # w_ref: (n_rows, L) resident packed parameter blob
    # o_ref: (8, Bt) lane-dense output tile (row 0 is the real fc3 output)
    x = x_ref[...]                                     # (Bt, D)
    w1 = w_ref[r1:r1 + Hs, 0:D]                        # (Hs, D)   PyTorch layout
    w2 = w_ref[r2:r2 + Hs, 0:Hs]                       # (Hs, Hs)
    w3 = w_ref[r3:r3 + 8, 0:Hs]                        # (8, Hs)   only row 0 nonzero
    b1 = w_ref[rb1:rb1 + Hs, 0:1]                      # (Hs, 1)
    b2 = w_ref[rb2:rb2 + Hs, 0:1]                      # (Hs, 1)
    b3 = w_ref[rb3:rb3 + 8, 0:1]                       # (8, 1)    only row 0 nonzero

    # Layer 1: fold the x-transpose into the contraction (A @ B^T pattern);
    # from here on activations are (Hs, Bt) with batch on the lane axis.
    h1 = lax.dot_general(w1, x, (((1,), (1,)), ((), ())),
                         preferred_element_type=jnp.float32)          # (Hs, Bt)
    h1 = jnp.maximum(h1 + b1, 0.0)
    h2 = jnp.maximum(jnp.dot(w2, h1, preferred_element_type=jnp.float32) + b2, 0.0)
    out = jnp.dot(w3, h2, preferred_element_type=jnp.float32) + b3    # (8, Bt)
    o_ref[...] = out.astype(o_ref.dtype)


def pack_params(w1, b1, w2, b2, w3, b3):
    """Pack PyTorch-layout weights/biases into one lane-aligned f32 blob.

    w1: (H, D), w2: (H, H), w3: (1, H); b1, b2: (H,); b3: (1,).
    Zero padding of the hidden dim is a no-op through ReLU and the final dot.
    """
    H, D = w1.shape
    meta = _blob_layout(D, H)
    blob = jnp.zeros((meta["n_rows"], meta["L"]), jnp.float32)
    blob = blob.at[meta["r1"]:meta["r1"] + H, :D].set(w1.astype(jnp.float32))
    blob = blob.at[meta["r2"]:meta["r2"] + H, :H].set(w2.astype(jnp.float32))
    blob = blob.at[meta["r3"]:meta["r3"] + 1, :H].set(
        w3.reshape(1, H).astype(jnp.float32))
    blob = blob.at[meta["rb1"]:meta["rb1"] + H, 0].set(
        b1.reshape(H).astype(jnp.float32))
    blob = blob.at[meta["rb2"]:meta["rb2"] + H, 0].set(
        b2.reshape(H).astype(jnp.float32))
    blob = blob.at[meta["rb3"], 0].set(b3.reshape(()).astype(jnp.float32))
    return blob, meta


@functools.partial(
    jax.jit,
    static_argnames=("D", "H", "Hs", "L", "r1", "r2", "r3",
                     "rb1", "rb2", "rb3", "n_rows", "block_b"),
)
def network_1_forward(x, blob, *, D, H, Hs, L, r1, r2, r3, rb1, rb2, rb3,
                      n_rows, block_b=2048):
    B = x.shape[0]
    # Batch tile: multiple of 128 (batch lives on the lane axis of the output).
    # Cap at ~ceil(B/2) so large batches get >= 2 grid steps -> both v7x TCs.
    half = _round_up(max((B + 1) // 2, 1), 128)
    Bt = min(_round_up(max(block_b, 128), 128), half)
    Bp = _round_up(B, Bt)

    x32 = x.astype(jnp.float32)
    if Bp == B:
        x_in = x32                                     # no HBM padding pass needed
    else:
        x_in = jnp.zeros((Bp, D), jnp.float32).at[:B, :].set(x32)

    kernel = functools.partial(_mlp_kernel, D=D, Hs=Hs, r1=r1, r2=r2, r3=r3,
                               rb1=rb1, rb2=rb2, rb3=rb3)
    cost = pl.CostEstimate(
        flops=2 * Bp * (D * H + H * H + H),
        transcendentals=0,
        bytes_accessed=4 * (Bp * D + n_rows * L + 8 * Bp),
    )

    # Note: the blob could be single-buffered (pipeline_mode=pl.Buffered(1))
    # since its index_map is constant; left at the default for compatibility
    # (it is only ~120 KB of VMEM either way).
    out_pad = pl.pallas_call(
        kernel,
        out_shape=jax.ShapeDtypeStruct((8, Bp), jnp.float32),
        grid=(Bp // Bt,),
        in_specs=[
            pl.BlockSpec((Bt, D), lambda i: (i, 0)),        # streamed batch tile
            pl.BlockSpec((n_rows, L), lambda i: (0, 0)),    # resident packed params
        ],
        out_specs=pl.BlockSpec((8, Bt), lambda i: (0, i)),  # lane-dense output
        compiler_params=pltpu.CompilerParams(
            dimension_semantics=("parallel",),              # megacore / v7x 2nd TC
            vmem_limit_bytes=32 * 1024 * 1024,              # headroom on v5e (16 MiB default)
        ),
        cost_estimate=cost,
    )(x_in, blob)

    # Row 0 of the (8, Bp) slab carries the real fc3 output.
    return out_pad[0, :B][:, None]


def init_params(key, dim, hidden_size=50):
    # Deterministic init mimicking PyTorch nn.Linear (U(-1/sqrt(fan_in), ...)),
    # weights kept in PyTorch layout: (out_features, in_features), y = x @ W^T + b.
    ks = jax.random.split(key, 6)

    def lin(kw, kb, fan_in, fan_out):
        bound = 1.0 / jnp.sqrt(fan_in)
        w = jax.random.uniform(kw, (fan_out, fan_in), jnp.float32, -bound, bound)
        b = jax.random.uniform(kb, (fan_out,), jnp.float32, -bound, bound)
        return w, b

    w1, b1 = lin(ks[0], ks[1], dim, hidden_size)
    w2, b2 = lin(ks[2], ks[3], hidden_size, hidden_size)
    w3, b3 = lin(ks[4], ks[5], hidden_size, 1)
    return w1, b1, w2, b2, w3, b3


if __name__ == "__main__":
    key = jax.random.PRNGKey(0)
    k_x, k_p = jax.random.split(key)

    B, dim, hidden = 8, 32, 50
    x = jax.random.normal(k_x, (B, dim), jnp.float32)
    w1, b1, w2, b2, w3, b3 = init_params(k_p, dim, hidden)

    # Pack weights/biases once into the resident blob.
    blob, meta = pack_params(w1, b1, w2, b2, w3, b3)

    out = network_1_forward(x, blob, **meta)
    out = jax.block_until_ready(out)

    # Pure-JAX reference (PyTorch semantics: y = x @ W^T + b).
    h1 = jnp.maximum(x @ w1.T + b1, 0.0)
    h2 = jnp.maximum(h1 @ w2.T + b2, 0.0)
    ref = h2 @ w3.T + b3

    assert out.shape == (B, 1)
    assert jnp.allclose(out, ref, atol=2e-5, rtol=2e-5), \
        float(jnp.max(jnp.abs(out - ref)))

    print("KERNEL_OK")
</pallas_src>

<mosaic_0001>
module attributes {stable_mosaic.version = 11 : i64} {
  func.func @_mlp_kernel(%arg0: i32, %arg1: memref<128x32xf32, #tpu.memory_space<vmem>>, %arg2: memref<240x128xf32, #tpu.memory_space<vmem>>, %arg3: memref<8x128xf32, #tpu.memory_space<vmem>>) attributes {dimension_semantics = [#tpu.dimension_semantics<parallel>], iteration_bounds = array<i64: 1>, scalar_prefetch = 0 : i64, scratch_operands = 0 : i64, tpu.core_type = #tpu.core_type<tc>, window_params = [{transform_indices = @transform_0, window_bounds = array<i64: 128, 32>}, {pipeline_mode = #tpu.pipeline_mode<synchronous>, transform_indices = @transform_1, window_bounds = array<i64: 240, 128>}, {transform_indices = @transform_2, window_bounds = array<i64: 8, 128>}]} {
    %c0 = arith.constant 0 : index
    %c0_0 = arith.constant 0 : index
    %0 = vector.load %arg1[%c0, %c0_0] : memref<128x32xf32, #tpu.memory_space<vmem>>, vector<128x32xf32>
    %c0_1 = arith.constant 0 : index
    %c0_2 = arith.constant 0 : index
    %1 = vector.load %arg2[%c0_1, %c0_2] : memref<240x128xf32, #tpu.memory_space<vmem>>, vector<56x32xf32>
    %c56 = arith.constant 56 : index
    %c0_3 = arith.constant 0 : index
    %2 = vector.load %arg2[%c56, %c0_3] : memref<240x128xf32, #tpu.memory_space<vmem>>, vector<56x56xf32>
    %c112 = arith.constant 112 : index
    %c0_4 = arith.constant 0 : index
    %3 = vector.load %arg2[%c112, %c0_4] : memref<240x128xf32, #tpu.memory_space<vmem>>, vector<8x56xf32>
    %c120 = arith.constant 120 : index
    %c0_5 = arith.constant 0 : index
    %4 = vector.load %arg2[%c120, %c0_5] : memref<240x128xf32, #tpu.memory_space<vmem>>, vector<56x1xf32>
    %c176 = arith.constant 176 : index
    %c0_6 = arith.constant 0 : index
    %5 = vector.load %arg2[%c176, %c0_6] : memref<240x128xf32, #tpu.memory_space<vmem>>, vector<56x1xf32>
    %c232 = arith.constant 232 : index
    %c0_7 = arith.constant 0 : index
    %6 = vector.load %arg2[%c232, %c0_7] : memref<240x128xf32, #tpu.memory_space<vmem>>, vector<8x1xf32>
    %cst = arith.constant dense<0.000000e+00> : vector<56x128xf32>
    %7 = tpu.matmul %1, %0, %cst {dimension_numbers = #tpu.dot_dimension_numbers<[1], [1], [0], [0], [0, 0, 1, 0], [], []>} : vector<56x32xf32>, vector<128x32xf32>, vector<56x128xf32> -> vector<56x128xf32>
    %8 = vector.broadcast %4 : vector<56x1xf32> to vector<56x128xf32>
    %9 = arith.addf %7, %8 : vector<56x128xf32>
    %cst_8 = arith.constant 0.000000e+00 : f32
    %10 = vector.broadcast %cst_8 : f32 to vector<56x128xf32>
    %11 = arith.maximumf %9, %10 : vector<56x128xf32>
    %cst_9 = arith.constant dense<0.000000e+00> : vector<56x128xf32>
    %12 = tpu.matmul %2, %11, %cst_9 {dimension_numbers = #tpu.dot_dimension_numbers<[1], [0], [0], [1], [0, 0, 1, 1], [], []>} : vector<56x56xf32>, vector<56x128xf32>, vector<56x128xf32> -> vector<56x128xf32>
    %13 = vector.broadcast %5 : vector<56x1xf32> to vector<56x128xf32>
    %14 = arith.addf %12, %13 : vector<56x128xf32>
    %cst_10 = arith.constant 0.000000e+00 : f32
    %15 = vector.broadcast %cst_10 : f32 to vector<56x128xf32>
    %16 = arith.maximumf %14, %15 : vector<56x128xf32>
    %cst_11 = arith.constant dense<0.000000e+00> : vector<8x128xf32>
    %17 = tpu.matmul %3, %16, %cst_11 {dimension_numbers = #tpu.dot_dimension_numbers<[1], [0], [0], [1], [0, 0, 1, 1], [], []>} : vector<8x56xf32>, vector<56x128xf32>, vector<8x128xf32> -> vector<8x128xf32>
    %18 = vector.broadcast %6 : vector<8x1xf32> to vector<8x128xf32>
    %19 = arith.addf %17, %18 : vector<8x128xf32>
    %c0_12 = arith.constant 0 : index
    %c0_13 = arith.constant 0 : index
    %20 = vector.load %arg3[%c0_12, %c0_13] : memref<8x128xf32, #tpu.memory_space<vmem>>, vector<8x128xf32>
    tpu.vector_store %arg3[%c0_12, %c0_13], %19 {strides = array<i32>} : memref<8x128xf32, #tpu.memory_space<vmem>>, vector<8x128xf32>,
    return
  }
  func.func @transform_0(%arg0: i32) -> (i32, i32) {
    %c0_i32 = arith.constant 0 : i32
    %c0_i32_0 = arith.constant 0 : i32
    return %arg0, %c0_i32 : i32, i32
  }
  func.func @transform_1(%arg0: i32) -> (i32, i32) {
    %c0_i32 = arith.constant 0 : i32
    %c0_i32_0 = arith.constant 0 : i32
    %c0_i32_1 = arith.constant 0 : i32
    return %c0_i32, %c0_i32_0 : i32, i32
  }
  func.func @transform_2(%arg0: i32) -> (i32, i32) {
    %c0_i32 = arith.constant 0 : i32
    %c0_i32_0 = arith.constant 0 : i32
    return %c0_i32, %arg0 : i32, i32
  }
}

</mosaic_0001>

<llo_original>
// kernel: network_1_forward.1
$region0: #{network_1_forward.1}
  #allocation0 [shape = 'u32[]', space=smem, size = 0x4, offset = 0x4, fixed_abs, tag = 'smem constant byte address 0x4 - core index']
  #allocation1 [shape = 'u32[144,128]{1,0:T(1,128)}', space=vmem, size = 0x12000, scoped, tag = 'internal scratch']
  %s0 = inlined_call_operand.vmem [shape: f32[128,32], index: 0, kind: input, shape index: {}]
  %s1 = inlined_call_operand.hbm [shape: f32[240,128], index: 1, kind: input, shape index: {}]
  %s2 = inlined_call_operand.vmem [shape: f32[8,128], index: 2, kind: output, shape index: {}]
  %s3 = sld [smem:[#allocation0]]
  $region22: #{network_1_forward.1} parent=0
    _
  %s5 = ssub.s32 1, %s3
  %s6 = scalar_select 0, %s5, %s3
  $region1: #{network_1_forward.1} parent=0
    #allocation2 [shape = 'u8[122880]{0}', space=vmem, size = 0x1e000, scoped, tag = 'input window, operand 1, single buffered']
    #allocation3 [shape = 's32[1]{0}', space=sflag, size = 0x4, scoped, tag = 'scoped memory for network_1_forward.1']
    %7 = vsyncpa [#allocation3], 0
    // Predicated region
    $region2: #{network_1_forward.1} parent=1 // pred_check
      _
    $region3: #{network_1_forward.1} parent=1 // pred_check_branch
      %9 = sbr.rel (0) target = $region5
    $region4: #{network_1_forward.1} parent=1 // pred_region
      _
    $region5: #{network_1_forward.1} parent=1 // pred_fallthru
      _
    // Predicated region
    $region6: #{network_1_forward.1} parent=1 // pred_check
      _
    $region7: #{network_1_forward.1} parent=1 // pred_check_branch
      %11 = sbr.rel (0) target = $region9
    $region8: #{network_1_forward.1} parent=1 // pred_region
      %s13 = ssub.s32 3840, 3840
      %14 = vsyncadd [#allocation3], %s13
      %s15 = sshll.u32 [#allocation2], 4
      %s16 = int_to_ptr.vmem [resolvable:$true] %s15
      %21 = dma.hbm_to_vmem [thread:$0]  %s1, 3840, %s16, [#allocation3], 128, 128, 8
    $region9: #{network_1_forward.1} parent=1 // pred_fallthru
      _
    // Predicated region
    $region10: #{network_1_forward.1} parent=1 // pred_check
      _
    $region11: #{network_1_forward.1} parent=1 // pred_check_branch
      %23 = sbr.rel (0) target = $region13
    $region12: #{network_1_forward.1} parent=1 // pred_region
      %24 = dma.done [#allocation3], 3840
    $region13: #{network_1_forward.1} parent=1 // pred_fallthru
      _
    %v25 = vld [vmem:[%s0] sm:$0xff]
    %v26 = vld [vmem:[%s0 + $0x8] sm:$0xff]
    %v27 = vld [vmem:[%s0 + $0x10] sm:$0xff]
    %v28 = vld [vmem:[%s0 + $0x18] sm:$0xff]
    %v29 = vld [vmem:[%s0 + $0x20] sm:$0xff]
    %v30 = vld [vmem:[%s0 + $0x28] sm:$0xff]
    %v31 = vld [vmem:[%s0 + $0x30] sm:$0xff]
    %v32 = vld [vmem:[%s0 + $0x38] sm:$0xff]
    %v33 = vld [vmem:[%s0 + $0x40] sm:$0xff]
    %v34 = vld [vmem:[%s0 + $0x48] sm:$0xff]
    %v35 = vld [vmem:[%s0 + $0x50] sm:$0xff]
    %v36 = vld [vmem:[%s0 + $0x58] sm:$0xff]
    %v37 = vld [vmem:[%s0 + $0x60] sm:$0xff]
    %v38 = vld [vmem:[%s0 + $0x68] sm:$0xff]
    %v39 = vld [vmem:[%s0 + $0x70] sm:$0xff]
    %v40 = vld [vmem:[%s0 + $0x78] sm:$0xff]
    %v41 = vld [vmem:[#allocation2] sm:$0xff]
    %v42 = vld [vmem:[#allocation2 + $0x8] sm:$0xff]
    %v43 = vld [vmem:[#allocation2 + $0x10] sm:$0xff]
    %v44 = vld [vmem:[#allocation2 + $0x18] sm:$0xff]
    %v45 = vld [vmem:[#allocation2 + $0x20] sm:$0xff]
    %v46 = vld [vmem:[#allocation2 + $0x28] sm:$0xff]
    %v47 = vld [vmem:[#allocation2 + $0x30] sm:$0xff]
    %v48 = vld [vmem:[#allocation2 + $0x38] sm:$0xff]
    %v49 = vld [vmem:[#allocation2 + $0x40] sm:$0xff]
    %v50 = vld [vmem:[#allocation2 + $0x48] sm:$0xff]
    %v51 = vld [vmem:[#allocation2 + $0x50] sm:$0xff]
    %v52 = vld [vmem:[#allocation2 + $0x58] sm:$0xff]
    %v53 = vld [vmem:[#allocation2 + $0x60] sm:$0xff]
    %v54 = vld [vmem:[#allocation2 + $0x68] sm:$0xff]
    %v55 = vld [vmem:[#allocation2 + $0x70] sm:$0xff]
    %v56 = vld [vmem:[#allocation2 + $0x78] sm:$0xff]
    %v57 = vld [vmem:[#allocation2 + $0x80] sm:$0xff]
    %v58 = vld [vmem:[#allocation2 + $0x88] sm:$0xff]
    %v59 = vld [vmem:[#allocation2 + $0x90] sm:$0xff]
    %v60 = vld [vmem:[#allocation2 + $0x98] sm:$0xff]
    %v61 = vld [vmem:[#allocation2 + $0xa0] sm:$0xff]
    %v62 = vld [vmem:[#allocation2 + $0xa8] sm:$0xff]
    %v63 = vld [vmem:[#allocation2 + $0xb0] sm:$0xff]
    %v64 = vld [vmem:[#allocation2 + $0xb8] sm:$0xff]
    %v65 = vld [vmem:[#allocation2 + $0xc0] sm:$0xff]
    %v66 = vld [vmem:[#allocation2 + $0xc8] sm:$0xff]
    %v67 = vld [vmem:[#allocation2 + $0xd0] sm:$0xff]
    %v68 = vld [vmem:[#allocation2 + $0xd8] sm:$0xff]
    %v69 = vld [vmem:[#allocation2 + $0xe0] sm:$0xff]
    %v70 = vld [vmem:[#allocation2 + $0xe8] sm:$0xff]
    %72 = vset.pattern.permute.xlu0 0
    %73 = vperm.xlu0 %72, %v56
    %v74 = vpop.permute.xlu0 %73
    %77 = vset.pattern.permute.xlu0 0
    %78 = vperm.xlu0 %77, %v57
    %v79 = vpop.permute.xlu0 %78
    %82 = vset.pattern.permute.xlu0 0
    %83 = vperm.xlu0 %82, %v58
    %v84 = vpop.permute.xlu0 %83
    %87 = vset.pattern.permute.xlu0 0
    %88 = vperm.xlu0 %87, %v59
    %v89 = vpop.permute.xlu0 %88
    %92 = vset.pattern.permute.xlu0 0
    %93 = vperm.xlu0 %92, %v60
    %v94 = vpop.permute.xlu0 %93
    %97 = vset.pattern.permute.xlu0 0
    %98 = vperm.xlu0 %97, %v61
    %v99 = vpop.permute.xlu0 %98
    %102 = vset.pattern.permute.xlu0 0
    %103 = vperm.xlu0 %102, %v62
    %v104 = vpop.permute.xlu0 %103
    %vm106 = vcmask 261120
    %v108 = vsel %vm106, %v41, 0
    %v111 = vsel %vm106, %v42, 0
    %v114 = vsel %vm106, %v43, 0
    %v117 = vsel %vm106, %v44, 0
    %v120 = vsel %vm106, %v45, 0
    %v123 = vsel %vm106, %v46, 0
    %v126 = vsel %vm106, %v47, 0
    %v129 = vsel %vm106, %v25, 0
    %v132 = vsel %vm106, %v26, 0
    %v135 = vsel %vm106, %v27, 0
    %v138 = vsel %vm106, %v28, 0
    %v141 = vsel %vm106, %v29, 0
    %v144 = vsel %vm106, %v30, 0
    %v147 = vsel %vm106, %v31, 0
    %v150 = vsel %vm106, %v32, 0
    %v153 = vsel %vm106, %v33, 0
    %v156 = vsel %vm106, %v34, 0
    %v159 = vsel %vm106, %v35, 0
    %v162 = vsel %vm106, %v36, 0
    %v165 = vsel %vm106, %v37, 0
    %v168 = vsel %vm106, %v38, 0
    %v171 = vsel %vm106, %v39, 0
    %v174 = vsel %vm106, %v40, 0
    %176 = vmatprep.subr.mxu0 0.0
    %177 = vmatpush1.xpose.msra.mxu0 %v174
    %178 = vmatprep.subr.mxu0 0.0
    %179 = vmatpush1.xpose.msra.mxu0 %v171
    %180 = vmatprep.subr.mxu0 0.0
    %181 = vmatpush1.xpose.msra.mxu0 %v168
    %182 = vmatprep.subr.mxu0 0.0
    %183 = vmatpush1.xpose.msra.mxu0 %v165
    %184 = vmatprep.subr.mxu0 0.0
    %185 = vmatpush1.xpose.msra.mxu0 %v162
    %186 = vmatprep.subr.mxu0 0.0
    %187 = vmatpush1.xpose.msra.mxu0 %v159
    %188 = vmatprep.subr.mxu0 0.0
    %189 = vmatpush1.xpose.msra.mxu0 %v156
    %190 = vmatprep.subr.mxu0 0.0
    %191 = vmatpush1.xpose.msra.mxu0 %v153
    %192 = vmatprep.subr.mxu0 0.0
    %193 = vmatpush1.xpose.msra.mxu0 %v150
    %194 = vmatprep.subr.mxu0 0.0
    %195 = vmatpush1.xpose.msra.mxu0 %v147
    %196 = vmatprep.subr.mxu0 0.0
    %197 = vmatpush1.xpose.msra.mxu0 %v144
    %198 = vmatprep.subr.mxu0 0.0
    %199 = vmatpush1.xpose.msra.mxu0 %v141
    %200 = vmatprep.subr.mxu0 0.0
    %201 = vmatpush1.xpose.msra.mxu0 %v138
    %202 = vmatprep.subr.mxu0 0.0
    %203 = vmatpush1.xpose.msra.mxu0 %v135
    %204 = vmatprep.subr.mxu0 0.0
    %205 = vmatpush1.xpose.msra.mxu0 %v132
    %206 = vmatprep.subr.mxu0 0.0
    %207 = vmatpush1.xpose.msra.mxu0 %v129
    %208 = vmatprep.subr.mxu0 0.0
    %209 = vmatpush2.xpose.msra.mxu0 0.0
    %210 = vmatprep.subr.mxu0 0.0
    %211 = vmatpush2.xpose.msra.mxu0 0.0
    %212 = vmatprep.subr.mxu0 0.0
    %213 = vmatpush2.xpose.msra.mxu0 0.0
    %214 = vmatprep.subr.mxu0 0.0
    %215 = vmatpush2.xpose.msra.mxu0 0.0
    %216 = vmatprep.subr.mxu0 0.0
    %217 = vmatpush2.xpose.msra.mxu0 0.0
    %218 = vmatprep.subr.mxu0 0.0
    %219 = vmatpush2.xpose.msra.mxu0 0.0
    %220 = vmatprep.subr.mxu0 0.0
    %221 = vmatpush2.xpose.msra.mxu0 0.0
    %222 = vmatprep.subr.mxu0 0.0
    %223 = vmatpush2.xpose.msra.mxu0 0.0
    %224 = vmatprep.subr.mxu0 0.0
    %225 = vmatpush2.xpose.msra.mxu0 0.0
    %226 = vmatprep.subr.mxu0 0.0
    %227 = vmatpush2.xpose.msra.mxu0 0.0
    %228 = vmatprep.subr.mxu0 0.0
    %229 = vmatpush2.xpose.msra.mxu0 0.0
    %230 = vmatprep.subr.mxu0 0.0
    %231 = vmatpush2.xpose.msra.mxu0 0.0
    %232 = vmatprep.subr.mxu0 0.0
    %233 = vmatpush2.xpose.msra.mxu0 0.0
    %234 = vmatprep.subr.mxu0 0.0
    %235 = vmatpush2.xpose.msra.mxu0 0.0
    %236 = vmatprep.subr.mxu0 0.0
    %237 = vmatpush2.xpose.msra.mxu0 0.0
    %238 = vmatprep.subr.mxu0 0.0
    %239 = vmatpush2.xpose.msra.mxu0 0.0
    %240 = vmatprep.mubr.f32.mxu0 0.0
    %241 = vmatmul.mubr.f32.gmra.mxu0 %v108
    %v242 = vpop.f32.mrf.mxu0
    %v243 = vadd.f32 %v74, %v242
    %v244 = vpop.f32.mrf.mxu0
    %245 = vmatprep.mubr.f32.mxu0 0.0
    %246 = vmatmul.mubr.f32.gmra.mxu0 %v111
    %v247 = vpop.f32.mrf.mxu0
    %v248 = vadd.f32 %v79, %v247
    %v249 = vpop.f32.mrf.mxu0
    %250 = vmatprep.mubr.f32.mxu0 0.0
    %251 = vmatmul.mubr.f32.gmra.mxu0 %v114
    %v252 = vpop.f32.mrf.mxu0
    %v253 = vadd.f32 %v84, %v252
    %v254 = vpop.f32.mrf.mxu0
    %255 = vmatprep.mubr.f32.mxu0 0.0
    %256 = vmatmul.mubr.f32.gmra.mxu0 %v117
    %v257 = vpop.f32.mrf.mxu0
    %v258 = vadd.f32 %v89, %v257
    %v259 = vpop.f32.mrf.mxu0
    %260 = vmatprep.mubr.f32.mxu0 0.0
    %261 = vmatmul.mubr.f32.gmra.mxu0 %v120
    %v262 = vpop.f32.mrf.mxu0
    %v263 = vadd.f32 %v94, %v262
    %v264 = vpop.f32.mrf.mxu0
    %265 = vmatprep.mubr.f32.mxu0 0.0
    %266 = vmatmul.mubr.f32.gmra.mxu0 %v123
    %v267 = vpop.f32.mrf.mxu0
    %v268 = vadd.f32 %v99, %v267
    %v269 = vpop.f32.mrf.mxu0
    %270 = vmatprep.mubr.f32.mxu0 0.0
    %271 = vmatmul.mubr.f32.gmra.mxu0 %v126
    %v272 = vpop.f32.mrf.mxu0
    %v273 = vadd.f32 %v104, %v272
    %v274 = vpop.f32.mrf.mxu0
    %275 = vdwg.mxu0
    %v276 = vmax.f32 %v243, 0.0
    %v277 = vmax.f32 %v248, 0.0
    %v278 = vmax.f32 %v253, 0.0
    %v279 = vmax.f32 %v258, 0.0
    %v280 = vmax.f32 %v263, 0.0
    %v281 = vmax.f32 %v268, 0.0
    %v282 = vmax.f32 %v273, 0.0
    %284 = vset.pattern.permute.xlu0 0
    %285 = vperm.xlu0 %284, %v63
    %v286 = vpop.permute.xlu0 %285
    %289 = vset.pattern.permute.xlu0 0
    %290 = vperm.xlu0 %289, %v64
    %v291 = vpop.permute.xlu0 %290
    %294 = vset.pattern.permute.xlu0 0
    %295 = vperm.xlu0 %294, %v65
    %v296 = vpop.permute.xlu0 %295
    %299 = vset.pattern.permute.xlu0 0
    %300 = vperm.xlu0 %299, %v66
    %v301 = vpop.permute.xlu0 %300
    %304 = vset.pattern.permute.xlu0 0
    %305 = vperm.xlu0 %304, %v67
    %v306 = vpop.permute.xlu0 %305
    %309 = vset.pattern.permute.xlu0 0
    %310 = vperm.xlu0 %309, %v68
    %v311 = vpop.permute.xlu0 %310
    %314 = vset.pattern.permute.xlu0 0
    %315 = vperm.xlu0 %314, %v69
    %v316 = vpop.permute.xlu0 %315
    %vm318 = vcmask 457728
    %v320 = vsel %vm318, %v48, 0
    %v323 = vsel %vm318, %v49, 0
    %v326 = vsel %vm318, %v50, 0
    %v329 = vsel %vm318, %v51, 0
    %v332 = vsel %vm318, %v52, 0
    %v335 = vsel %vm318, %v53, 0
    %v338 = vsel %vm318, %v54, 0
    %340 = vmatprep.subr.mxu0 0.0
    %341 = vmatpush1.msra.mxu0 0.0
    %342 = vmatprep.subr.mxu0 0.0
    %343 = vmatpush1.msra.mxu0 0.0
    %344 = vmatprep.subr.mxu0 0.0
    %345 = vmatpush1.msra.mxu0 0.0
    %346 = vmatprep.subr.mxu0 0.0
    %347 = vmatpush1.msra.mxu0 0.0
    %348 = vmatprep.subr.mxu0 0.0
    %349 = vmatpush1.msra.mxu0 0.0
    %350 = vmatprep.subr.mxu0 0.0
    %351 = vmatpush1.msra.mxu0 0.0
    %352 = vmatprep.subr.mxu0 0.0
    %353 = vmatpush1.msra.mxu0 0.0
    %354 = vmatprep.subr.mxu0 0.0
    %355 = vmatpush1.msra.mxu0 0.0
    %356 = vmatprep.subr.mxu0 0.0
    %357 = vmatpush1.msra.mxu0 0.0
    %358 = vmatprep.subr.mxu0 0.0
    %359 = vmatpush1.msra.mxu0 %v282
    %360 = vmatprep.subr.mxu0 0.0
    %361 = vmatpush1.msra.mxu0 %v281
    %362 = vmatprep.subr.mxu0 0.0
    %363 = vmatpush1.msra.mxu0 %v280
    %364 = vmatprep.subr.mxu0 0.0
    %365 = vmatpush1.msra.mxu0 %v279
    %366 = vmatprep.subr.mxu0 0.0
    %367 = vmatpush1.msra.mxu0 %v278
    %368 = vmatprep.subr.mxu0 0.0
    %369 = vmatpush1.msra.mxu0 %v277
    %370 = vmatprep.subr.mxu0 0.0
    %371 = vmatpush1.msra.mxu0 %v276
    %372 = vmatprep.subr.mxu0 0.0
    %373 = vmatpush2.msra.mxu0 0.0
    %374 = vmatprep.subr.mxu0 0.0
    %375 = vmatpush2.msra.mxu0 0.0
    %376 = vmatprep.subr.mxu0 0.0
    %377 = vmatpush2.msra.mxu0 0.0
    %378 = vmatprep.subr.mxu0 0.0
    %379 = vmatpush2.msra.mxu0 0.0
    %380 = vmatprep.subr.mxu0 0.0
    %381 = vmatpush2.msra.mxu0 0.0
    %382 = vmatprep.subr.mxu0 0.0
    %383 = vmatpush2.msra.mxu0 0.0
    %384 = vmatprep.subr.mxu0 0.0
    %385 = vmatpush2.msra.mxu0 0.0
    %386 = vmatprep.subr.mxu0 0.0
    %387 = vmatpush2.msra.mxu0 0.0
    %388 = vmatprep.subr.mxu0 0.0
    %389 = vmatpush2.msra.mxu0 0.0
    %390 = vmatprep.subr.mxu0 0.0
    %391 = vmatpush2.msra.mxu0 0.0
    %392 = vmatprep.subr.mxu0 0.0
    %393 = vmatpush2.msra.mxu0 0.0
    %394 = vmatprep.subr.mxu0 0.0
    %395 = vmatpush2.msra.mxu0 0.0
    %396 = vmatprep.subr.mxu0 0.0
    %397 = vmatpush2.msra.mxu0 0.0
    %398 = vmatprep.subr.mxu0 0.0
    %399 = vmatpush2.msra.mxu0 0.0
    %400 = vmatprep.subr.mxu0 0.0
    %401 = vmatpush2.msra.mxu0 0.0
    %402 = vmatprep.subr.mxu0 0.0
    %403 = vmatpush2.msra.mxu0 0.0
    %404 = vmatprep.mubr.f32.mxu0 0.0
    %405 = vmatmul.mubr.f32.gmra.mxu0 %v320
    %v406 = vpop.f32.mrf.mxu0
    %v407 = vadd.f32 %v286, %v406
    %v408 = vpop.f32.mrf.mxu0
    %409 = vmatprep.mubr.f32.mxu0 0.0
    %410 = vmatmul.mubr.f32.gmra.mxu0 %v323
    %v411 = vpop.f32.mrf.mxu0
    %v412 = vadd.f32 %v291, %v411
    %v413 = vpop.f32.mrf.mxu0
    %414 = vmatprep.mubr.f32.mxu0 0.0
    %415 = vmatmul.mubr.f32.gmra.mxu0 %v326
    %v416 = vpop.f32.mrf.mxu0
    %v417 = vadd.f32 %v296, %v416
    %v418 = vpop.f32.mrf.mxu0
    %419 = vmatprep.mubr.f32.mxu0 0.0
    %420 = vmatmul.mubr.f32.gmra.mxu0 %v329
    %v421 = vpop.f32.mrf.mxu0
    %v422 = vadd.f32 %v301, %v421
    %v423 = vpop.f32.mrf.mxu0
    %424 = vmatprep.mubr.f32.mxu0 0.0
    %425 = vmatmul.mubr.f32.gmra.mxu0 %v332
    %v426 = vpop.f32.mrf.mxu0
    %v427 = vadd.f32 %v306, %v426
    %v428 = vpop.f32.mrf.mxu0
    %429 = vmatprep.mubr.f32.mxu0 0.0
    %430 = vmatmul.mubr.f32.gmra.mxu0 %v335
    %v431 = vpop.f32.mrf.mxu0
    %v432 = vadd.f32 %v311, %v431
    %v433 = vpop.f32.mrf.mxu0
    %434 = vmatprep.mubr.f32.mxu0 0.0
    %435 = vmatmul.mubr.f32.gmra.mxu0 %v338
    %v436 = vpop.f32.mrf.mxu0
    %v437 = vadd.f32 %v316, %v436
    %v438 = vpop.f32.mrf.mxu0
    %439 = vdwg.mxu0
    %v440 = vmax.f32 %v407, 0.0
    %v441 = vmax.f32 %v412, 0.0
    %v442 = vmax.f32 %v417, 0.0
    %v443 = vmax.f32 %v422, 0.0
    %v444 = vmax.f32 %v427, 0.0
    %v445 = vmax.f32 %v432, 0.0
    %v446 = vmax.f32 %v437, 0.0
    %448 = vset.pattern.permute.xlu0 0
    %449 = vperm.xlu0 %448, %v70
    %v450 = vpop.permute.xlu0 %449
    %v453 = vsel %vm318, %v55, 0
    %455 = vmatprep.subr.mxu0 0.0
    %456 = vmatpush1.msra.mxu0 0.0
    %457 = vmatprep.subr.mxu0 0.0
    %458 = vmatpush1.msra.mxu0 0.0
    %459 = vmatprep.subr.mxu0 0.0
    %460 = vmatpush1.msra.mxu0 0.0
    %461 = vmatprep.subr.mxu0 0.0
    %462 = vmatpush1.msra.mxu0 0.0
    %463 = vmatprep.subr.mxu0 0.0
    %464 = vmatpush1.msra.mxu0 0.0
    %465 = vmatprep.subr.mxu0 0.0
    %466 = vmatpush1.msra.mxu0 0.0
    %467 = vmatprep.subr.mxu0 0.0
    %468 = vmatpush1.msra.mxu0 0.0
    %469 = vmatprep.subr.mxu0 0.0
    %470 = vmatpush1.msra.mxu0 0.0
    %471 = vmatprep.subr.mxu0 0.0
    %472 = vmatpush1.msra.mxu0 0.0
    %473 = vmatprep.subr.mxu0 0.0
    %474 = vmatpush1.msra.mxu0 %v446
    %475 = vmatprep.subr.mxu0 0.0
    %476 = vmatpush1.msra.mxu0 %v445
    %477 = vmatprep.subr.mxu0 0.0
    %478 = vmatpush1.msra.mxu0 %v444
    %479 = vmatprep.subr.mxu0 0.0
    %480 = vmatpush1.msra.mxu0 %v443
    %481 = vmatprep.subr.mxu0 0.0
    %482 = vmatpush1.msra.mxu0 %v442
    %483 = vmatprep.subr.mxu0 0.0
    %484 = vmatpush1.msra.mxu0 %v441
    %485 = vmatprep.subr.mxu0 0.0
    %486 = vmatpush1.msra.mxu0 %v440
    %487 = vmatprep.subr.mxu0 0.0
    %488 = vmatpush2.msra.mxu0 0.0
    %489 = vmatprep.subr.mxu0 0.0
    %490 = vmatpush2.msra.mxu0 0.0
    %491 = vmatprep.subr.mxu0 0.0
    %492 = vmatpush2.msra.mxu0 0.0
    %493 = vmatprep.subr.mxu0 0.0
    %494 = vmatpush2.msra.mxu0 0.0
    %495 = vmatprep.subr.mxu0 0.0
    %496 = vmatpush2.msra.mxu0 0.0
    %497 = vmatprep.subr.mxu0 0.0
    %498 = vmatpush2.msra.mxu0 0.0
    %499 = vmatprep.subr.mxu0 0.0
    %500 = vmatpush2.msra.mxu0 0.0
    %501 = vmatprep.subr.mxu0 0.0
    %502 = vmatpush2.msra.mxu0 0.0
    %503 = vmatprep.subr.mxu0 0.0
    %504 = vmatpush2.msra.mxu0 0.0
    %505 = vmatprep.subr.mxu0 0.0
    %506 = vmatpush2.msra.mxu0 0.0
    %507 = vmatprep.subr.mxu0 0.0
    %508 = vmatpush2.msra.mxu0 0.0
    %509 = vmatprep.subr.mxu0 0.0
    %510 = vmatpush2.msra.mxu0 0.0
    %511 = vmatprep.subr.mxu0 0.0
    %512 = vmatpush2.msra.mxu0 0.0
    %513 = vmatprep.subr.mxu0 0.0
    %514 = vmatpush2.msra.mxu0 0.0
    %515 = vmatprep.subr.mxu0 0.0
    %516 = vmatpush2.msra.mxu0 0.0
    %517 = vmatprep.subr.mxu0 0.0
    %518 = vmatpush2.msra.mxu0 0.0
    %519 = vmatprep.mubr.f32.mxu0 0.0
    %520 = vmatmul.mubr.f32.gmra.mxu0 %v453
    %v521 = vpop.f32.mrf.mxu0
    %v522 = vadd.f32 %v450, %v521
    %v523 = vpop.f32.mrf.mxu0
    %524 = vdwg.mxu0
    %525 = vst [vmem:[%s2] sm:$0xff] %v522
    // Predicated region
    $region14: #{network_1_forward.1} parent=1 // pred_check
      _
    $region15: #{network_1_forward.1} parent=1 // pred_check_branch
      %527 = sbr.rel (0) target = $region17
    $region16: #{network_1_forward.1} parent=1 // pred_region
      _
    $region17: #{network_1_forward.1} parent=1 // pred_fallthru
      _
    // Predicated region
    $region18: #{network_1_forward.1} parent=1 // pred_check
      _
    $region19: #{network_1_forward.1} parent=1 // pred_check_branch
      %529 = sbr.rel (0) target = $region21
    $region20: #{network_1_forward.1} parent=1 // pred_region
      _
    $region21: #{network_1_forward.1} parent=1 // pred_fallthru
      _
    %530 = vsyncpa [#allocation3], 1

</llo_original>
